<compile_context>
chip_gen: v5e
topology: v5e:2x2
jax: 0.10.0
libtpu: 0.0.40
codegen_flags: <defaults>
</compile_context>

<pallas_src>
import jax
import jax.numpy as jnp
from jax.experimental import pallas as pl
from jax.experimental.pallas import tpu as pltpu


NEG_INF = -1000000000.0


def actor_critic_kernel(xt_ref, mask_ref, at_ref, poolw_ref,
                        w1t_ref, b1t_ref, w2t_ref, b2t_ref,
                        wht_ref, bht_ref,
                        logits_ref, value_ref):
    """Forward for a block of Bb graphs in feature-major layout.

    xt_ref    [Bb, Cin, Np] bf16  node features (transposed, zero-padded)
    mask_ref  [Bb, 1,   Np] f32   1.0 = available (0 on padding)
    at_ref    [Np, Np]      bf16  A_hat^T (shared, symmetric-normalized adjacency)
    poolw_ref [1, Np]       f32   1/n on real nodes, 0 on padding
    w1t_ref   [H, Cin] bf16 ; b1t_ref [H, 1] f32
    w2t_ref   [H, H]   bf16 ; b2t_ref [H, 1] f32
    wht_ref   [2, H]   bf16  fused [policy; value] head weight
    bht_ref   [2, 1]   f32   fused head bias
    logits_ref [Bb, 1, Np] f32   lane-dense logits rows
    value_ref  [Bb, 1, 1]  f32
    """
    at = at_ref[...]
    poolw = poolw_ref[...]
    w1t = w1t_ref[...]
    b1t = b1t_ref[...]
    w2t = w2t_ref[...]
    b2t = b2t_ref[...]
    wht = wht_ref[...]
    bht = bht_ref[...]

    bb = xt_ref.shape[0]
    for g in range(bb):          # static unroll: several graphs per grid step
        xg = xt_ref[g]           # [Cin, Np] bf16

        # GCNConv 1 (reassociated): the NxN contraction uses Cin rows, not H.
        xa = jnp.dot(xg, at, preferred_element_type=jnp.float32)          # [Cin, Np]
        h = jnp.dot(w1t, xa.astype(jnp.bfloat16),
                    preferred_element_type=jnp.float32) + b1t             # [H, Np]
        h = jnp.maximum(h, 0.0)

        # GCNConv 2
        h2 = jnp.dot(w2t, h.astype(jnp.bfloat16),
                     preferred_element_type=jnp.float32)
        h2 = jnp.dot(h2.astype(jnp.bfloat16), at,
                     preferred_element_type=jnp.float32) + b2t
        h2 = jnp.maximum(h2, 0.0)

        # Fused policy/value head: [2, H] @ [H, Np] -> [2, Np]
        heads = jnp.dot(wht, h2.astype(jnp.bfloat16),
                        preferred_element_type=jnp.float32) + bht

        logits_ref[g] = jnp.where(mask_ref[g] > 0.5, heads[0:1, :], NEG_INF)
        # value_head(global_mean_pool(h2)) via masked mean (padding excluded)
        value_ref[g] = jnp.sum(heads[1:2, :] * poolw, axis=1, keepdims=True)


def _round_up(v, m):
    return -(-v // m) * m


def _graphs_per_block(batch):
    # Amortize the ~0.35us per-grid-step overhead across graphs while keeping
    # at least 2 grid steps when possible so both v7x TensorCores get work
    # under dimension_semantics=("parallel",).
    if batch <= 2:
        return 1
    return min(8, max(1, batch // 2))


def build_norm_adj(edge_index, num_nodes):
    """Dense A_hat = D^{-1/2}(A + I_missing)D^{-1/2} (PyG gcn_norm).

    edge_index: [2, E] int32 (src row 0, dst row 1), topology shared across the
    batch.  Scatter-add build (O(E + N^2)); self-loops are added only to nodes
    that lack one (add_remaining_self_loops semantics).
    """
    src = edge_index[0]
    dst = edge_index[1]
    a = jnp.zeros((num_nodes, num_nodes), jnp.float32).at[dst, src].add(1.0)
    idx = jnp.arange(num_nodes)
    has_self = a[idx, idx] > 0
    a = a.at[idx, idx].add(jnp.where(has_self, 0.0, 1.0))
    deg = jnp.sum(a, axis=1)
    dinv = jnp.where(deg > 0, jax.lax.rsqrt(deg), 0.0)
    return dinv[:, None] * a * dinv[None, :]


@jax.jit
def actor_critic_forward(x, edge_index, mask, params):
    """Batched forward.  x [B,N,Cin] f32, edge_index [2,E] int32 (shared
    topology), mask [B,N] bool.  Returns (logits [B,N] f32, value [B] f32)."""
    b, n, cin = x.shape
    h = params["w1"].shape[1]

    n_pad = _round_up(max(n, 128), 128)
    bb = _graphs_per_block(b)
    b_pad = _round_up(b, bb)
    grid = b_pad // bb

    # XLA-side glue: scatter adjacency build + layout/dtype prep.
    # TODO(synk): hoist a_hat_t out of the per-step path when topology is static.
    a_hat = build_norm_adj(edge_index, n)
    a_hat_t = jnp.pad(a_hat, ((0, n_pad - n), (0, n_pad - n))).T.astype(jnp.bfloat16)

    x_t = jnp.swapaxes(jnp.pad(x, ((0, b_pad - b), (0, n_pad - n), (0, 0))),
                       1, 2).astype(jnp.bfloat16)                    # [Bp, Cin, Np]
    mask_f = jnp.pad(mask, ((0, b_pad - b), (0, n_pad - n))) \
                .astype(jnp.float32).reshape(b_pad, 1, n_pad)
    pool_w = jnp.pad(jnp.full((1, n), 1.0 / n, jnp.float32),
                     ((0, 0), (0, n_pad - n)))                        # [1, Np]

    w1_t = params["w1"].T.astype(jnp.bfloat16)                        # [H, Cin]
    w2_t = params["w2"].T.astype(jnp.bfloat16)                        # [H, H]
    b1_t = params["b1"].reshape(h, 1)
    b2_t = params["b2"].reshape(h, 1)
    wh_t = jnp.concatenate([params["wp"], params["wv"]],
                           axis=1).T.astype(jnp.bfloat16)             # [2, H]
    bh_t = jnp.concatenate([params["bp"], params["bv"]], axis=1).reshape(2, 1)

    flops = 2 * b_pad * (cin * n_pad * n_pad + h * cin * n_pad
                         + h * n_pad * n_pad + h * h * n_pad + 2 * h * n_pad)
    bytes_accessed = (2 * (n_pad * n_pad + h * cin + h * h + 2 * h)
                      + 4 * (2 * h + 2 + n_pad)
                      + b_pad * (2 * cin * n_pad + 4 * n_pad)
                      + b_pad * 4 * (n_pad + 1))

    def graph_spec(shape):
        return pl.BlockSpec(shape, lambda i: (i, 0, 0))

    def const_spec(shape):
        return pl.BlockSpec(shape, lambda i: (0, 0))

    logits3, value3 = pl.pallas_call(
        actor_critic_kernel,
        grid=(grid,),
        out_shape=(
            jax.ShapeDtypeStruct((b_pad, 1, n_pad), jnp.float32),
            jax.ShapeDtypeStruct((b_pad, 1, 1), jnp.float32),
        ),
        in_specs=[
            graph_spec((bb, cin, n_pad)),   # x^T (block of bb graphs)
            graph_spec((bb, 1, n_pad)),     # availability mask
            const_spec((n_pad, n_pad)),     # A_hat^T (shared; DMA'd once)
            const_spec((1, n_pad)),         # pooling weights (1/n, 0 on pad)
            const_spec((h, cin)),           # W1^T
            const_spec((h, 1)),             # b1^T
            const_spec((h, h)),             # W2^T
            const_spec((h, 1)),             # b2^T
            const_spec((2, h)),             # fused head weight^T
            const_spec((2, 1)),             # fused head bias
        ],
        out_specs=(
            graph_spec((bb, 1, n_pad)),     # lane-dense logits rows
            graph_spec((bb, 1, 1)),         # values
        ),
        compiler_params=pltpu.CompilerParams(
            dimension_semantics=("parallel",),
            # 48 MiB: above the 16/32 MiB scoped defaults, below v7x's 64 MiB
            # physical VMEM; raise toward 96 MiB on v5e/v6e if N grows.
            vmem_limit_bytes=48 * 1024 * 1024,
        ),
        cost_estimate=pl.CostEstimate(
            flops=flops, transcendentals=0, bytes_accessed=bytes_accessed),
    )(x_t, mask_f, a_hat_t, pool_w, w1_t, b1_t, w2_t, b2_t, wh_t, bh_t)

    return logits3[:b, 0, :n], value3[:b, 0, 0]


def init_params(key, in_channels, hidden_channels):
    ks = jax.random.split(key, 6)
    s1 = 1.0 / jnp.sqrt(in_channels)
    s2 = 1.0 / jnp.sqrt(hidden_channels)
    return {
        # GCNConv weights: [in, out], bias [1, out]
        "w1": jax.random.uniform(ks[0], (in_channels, hidden_channels),
                                 jnp.float32, -s1, s1),
        "b1": jnp.zeros((1, hidden_channels), jnp.float32),
        "w2": jax.random.uniform(ks[1], (hidden_channels, hidden_channels),
                                 jnp.float32, -s2, s2),
        "b2": jnp.zeros((1, hidden_channels), jnp.float32),
        # Linear heads: weight [hidden, 1], bias [1, 1]
        "wp": jax.random.uniform(ks[2], (hidden_channels, 1), jnp.float32, -s2, s2),
        "bp": jax.random.uniform(ks[3], (1, 1), jnp.float32, -s2, s2),
        "wv": jax.random.uniform(ks[4], (hidden_channels, 1), jnp.float32, -s2, s2),
        "bv": jax.random.uniform(ks[5], (1, 1), jnp.float32, -s2, s2),
    }


def reference_forward(x, edge_index, mask, params):
    """Pure-JAX f32 reference with the original (node-major) formulation."""
    a_hat = build_norm_adj(edge_index, x.shape[1])
    h = jax.nn.relu(jnp.einsum("ij,bjc->bic", a_hat, x @ params["w1"]) + params["b1"])
    h2 = jax.nn.relu(jnp.einsum("ij,bjc->bic", a_hat, h @ params["w2"]) + params["b2"])
    logits = (h2 @ params["wp"])[..., 0] + params["bp"][0, 0]
    logits = jnp.where(mask, logits, NEG_INF)
    pooled = jnp.mean(h2, axis=1)
    value = (pooled @ params["wv"])[:, 0] + params["bv"][0, 0]
    return logits, value


if __name__ == "__main__":
    key = jax.random.PRNGKey(0)
    k_x, k_p = jax.random.split(key)

    batch = 2
    num_nodes = 8
    in_channels = 4
    hidden_channels = 32

    # Node features
    x = jax.random.normal(k_x, (batch, num_nodes, in_channels), jnp.float32)

    # Bidirectional ring graph, topology shared across the batch
    src = jnp.arange(num_nodes, dtype=jnp.int32)
    dst = (src + 1) % num_nodes
    edge_index = jnp.concatenate([jnp.stack([src, dst]),
                                  jnp.stack([dst, src])], axis=1).astype(jnp.int32)

    # Availability mask (node 3 unavailable in every graph)
    mask = jnp.ones((batch, num_nodes), jnp.bool_).at[:, 3].set(False)

    params = init_params(k_p, in_channels, hidden_channels)

    logits, state_value = actor_critic_forward(x, edge_index, mask, params)
    jax.block_until_ready((logits, state_value))

    assert logits.shape == (batch, num_nodes)
    assert state_value.shape == (batch,)
    assert float(logits[0, 3]) <= NEG_INF / 2   # masked node
    assert float(logits[1, 3]) <= NEG_INF / 2

    ref_logits, ref_value = reference_forward(x, edge_index, mask, params)
    assert float(jnp.max(jnp.abs(logits - ref_logits))) < 0.1        # bf16 tolerance
    assert float(jnp.max(jnp.abs(state_value - ref_value))) < 0.1

    print("KERNEL_OK")
</pallas_src>

<mosaic_0001>
module attributes {stable_mosaic.version = 11 : i64} {
  func.func @actor_critic_kernel(%arg0: i32, %arg1: memref<1x4x128xbf16, #tpu.memory_space<vmem>>, %arg2: memref<1x1x128xf32, #tpu.memory_space<vmem>>, %arg3: memref<128x128xbf16, #tpu.memory_space<vmem>>, %arg4: memref<1x128xf32, #tpu.memory_space<vmem>>, %arg5: memref<32x4xbf16, #tpu.memory_space<vmem>>, %arg6: memref<32x1xf32, #tpu.memory_space<vmem>>, %arg7: memref<32x32xbf16, #tpu.memory_space<vmem>>, %arg8: memref<32x1xf32, #tpu.memory_space<vmem>>, %arg9: memref<2x32xbf16, #tpu.memory_space<vmem>>, %arg10: memref<2x1xf32, #tpu.memory_space<vmem>>, %arg11: memref<1x1x128xf32, #tpu.memory_space<vmem>>, %arg12: memref<1x1x1xf32, #tpu.memory_space<vmem>>) attributes {dimension_semantics = [#tpu.dimension_semantics<parallel>], iteration_bounds = array<i64: 2>, scalar_prefetch = 0 : i64, scratch_operands = 0 : i64, tpu.core_type = #tpu.core_type<tc>, window_params = [{transform_indices = @transform_0, window_bounds = array<i64: 1, 4, 128>}, {transform_indices = @transform_1, window_bounds = array<i64: 1, 1, 128>}, {pipeline_mode = #tpu.pipeline_mode<synchronous>, transform_indices = @transform_2, window_bounds = array<i64: 128, 128>}, {pipeline_mode = #tpu.pipeline_mode<synchronous>, transform_indices = @transform_3, window_bounds = array<i64: 1, 128>}, {pipeline_mode = #tpu.pipeline_mode<synchronous>, transform_indices = @transform_4, window_bounds = array<i64: 32, 4>}, {pipeline_mode = #tpu.pipeline_mode<synchronous>, transform_indices = @transform_5, window_bounds = array<i64: 32, 1>}, {pipeline_mode = #tpu.pipeline_mode<synchronous>, transform_indices = @transform_6, window_bounds = array<i64: 32, 32>}, {pipeline_mode = #tpu.pipeline_mode<synchronous>, transform_indices = @transform_7, window_bounds = array<i64: 32, 1>}, {pipeline_mode = #tpu.pipeline_mode<synchronous>, transform_indices = @transform_8, window_bounds = array<i64: 2, 32>}, {pipeline_mode = #tpu.pipeline_mode<synchronous>, transform_indices = @transform_9, window_bounds = array<i64: 2, 1>}, {transform_indices = @transform_10, window_bounds = array<i64: 1, 1, 128>}, {transform_indices = @transform_11, window_bounds = array<i64: 1, 1, 1>}]} {
    %c0 = arith.constant 0 : index
    %c0_0 = arith.constant 0 : index
    %0 = vector.load %arg3[%c0, %c0_0] : memref<128x128xbf16, #tpu.memory_space<vmem>>, vector<128x128xbf16>
    %c0_1 = arith.constant 0 : index
    %c0_2 = arith.constant 0 : index
    %1 = vector.load %arg4[%c0_1, %c0_2] : memref<1x128xf32, #tpu.memory_space<vmem>>, vector<1x128xf32>
    %c0_3 = arith.constant 0 : index
    %c0_4 = arith.constant 0 : index
    %2 = vector.load %arg5[%c0_3, %c0_4] : memref<32x4xbf16, #tpu.memory_space<vmem>>, vector<32x4xbf16>
    %c0_5 = arith.constant 0 : index
    %c0_6 = arith.constant 0 : index
    %3 = vector.load %arg6[%c0_5, %c0_6] : memref<32x1xf32, #tpu.memory_space<vmem>>, vector<32x1xf32>
    %c0_7 = arith.constant 0 : index
    %c0_8 = arith.constant 0 : index
    %4 = vector.load %arg7[%c0_7, %c0_8] : memref<32x32xbf16, #tpu.memory_space<vmem>>, vector<32x32xbf16>
    %c0_9 = arith.constant 0 : index
    %c0_10 = arith.constant 0 : index
    %5 = vector.load %arg8[%c0_9, %c0_10] : memref<32x1xf32, #tpu.memory_space<vmem>>, vector<32x1xf32>
    %c0_11 = arith.constant 0 : index
    %c0_12 = arith.constant 0 : index
    %6 = vector.load %arg9[%c0_11, %c0_12] : memref<2x32xbf16, #tpu.memory_space<vmem>>, vector<2x32xbf16>
    %c0_13 = arith.constant 0 : index
    %c0_14 = arith.constant 0 : index
    %7 = vector.load %arg10[%c0_13, %c0_14] : memref<2x1xf32, #tpu.memory_space<vmem>>, vector<2x1xf32>
    %c0_15 = arith.constant 0 : index
    %c0_16 = arith.constant 0 : index
    %c0_17 = arith.constant 0 : index
    %8 = vector.load %arg1[%c0_15, %c0_16, %c0_17] : memref<1x4x128xbf16, #tpu.memory_space<vmem>>, vector<1x4x128xbf16>
    %9 = vector.shape_cast %8 : vector<1x4x128xbf16> to vector<4x128xbf16>
    %cst = arith.constant dense<0.000000e+00> : vector<4x128xf32>
    %10 = tpu.matmul %9, %0, %cst {dimension_numbers = #tpu.dot_dimension_numbers<[1], [0], [0], [1], [0, 0, 1, 1], [], []>} : vector<4x128xbf16>, vector<128x128xbf16>, vector<4x128xf32> -> vector<4x128xf32>
    %11 = arith.truncf %10 : vector<4x128xf32> to vector<4x128xbf16>
    %cst_18 = arith.constant dense<0.000000e+00> : vector<32x128xf32>
    %12 = tpu.matmul %2, %11, %cst_18 {dimension_numbers = #tpu.dot_dimension_numbers<[1], [0], [0], [1], [0, 0, 1, 1], [], []>} : vector<32x4xbf16>, vector<4x128xbf16>, vector<32x128xf32> -> vector<32x128xf32>
    %13 = vector.broadcast %3 : vector<32x1xf32> to vector<32x128xf32>
    %14 = arith.addf %12, %13 : vector<32x128xf32>
    %cst_19 = arith.constant 0.000000e+00 : f32
    %15 = vector.broadcast %cst_19 : f32 to vector<32x128xf32>
    %16 = arith.maximumf %14, %15 : vector<32x128xf32>
    %17 = arith.truncf %16 : vector<32x128xf32> to vector<32x128xbf16>
    %cst_20 = arith.constant dense<0.000000e+00> : vector<32x128xf32>
    %18 = tpu.matmul %4, %17, %cst_20 {dimension_numbers = #tpu.dot_dimension_numbers<[1], [0], [0], [1], [0, 0, 1, 1], [], []>} : vector<32x32xbf16>, vector<32x128xbf16>, vector<32x128xf32> -> vector<32x128xf32>
    %19 = arith.truncf %18 : vector<32x128xf32> to vector<32x128xbf16>
    %cst_21 = arith.constant dense<0.000000e+00> : vector<32x128xf32>
    %20 = tpu.matmul %19, %0, %cst_21 {dimension_numbers = #tpu.dot_dimension_numbers<[1], [0], [0], [1], [0, 0, 1, 1], [], []>} : vector<32x128xbf16>, vector<128x128xbf16>, vector<32x128xf32> -> vector<32x128xf32>
    %21 = vector.broadcast %5 : vector<32x1xf32> to vector<32x128xf32>
    %22 = arith.addf %20, %21 : vector<32x128xf32>
    %cst_22 = arith.constant 0.000000e+00 : f32
    %23 = vector.broadcast %cst_22 : f32 to vector<32x128xf32>
    %24 = arith.maximumf %22, %23 : vector<32x128xf32>
    %25 = arith.truncf %24 : vector<32x128xf32> to vector<32x128xbf16>
    %cst_23 = arith.constant dense<0.000000e+00> : vector<2x128xf32>
    %26 = tpu.matmul %6, %25, %cst_23 {dimension_numbers = #tpu.dot_dimension_numbers<[1], [0], [0], [1], [0, 0, 1, 1], [], []>} : vector<2x32xbf16>, vector<32x128xbf16>, vector<2x128xf32> -> vector<2x128xf32>
    %27 = vector.broadcast %7 : vector<2x1xf32> to vector<2x128xf32>
    %28 = arith.addf %26, %27 : vector<2x128xf32>
    %c0_24 = arith.constant 0 : index
    %c0_25 = arith.constant 0 : index
    %c0_26 = arith.constant 0 : index
    %29 = vector.load %arg2[%c0_24, %c0_25, %c0_26] : memref<1x1x128xf32, #tpu.memory_space<vmem>>, vector<1x1x128xf32>
    %30 = vector.shape_cast %29 : vector<1x1x128xf32> to vector<1x128xf32>
    %cst_27 = arith.constant 5.000000e-01 : f32
    %31 = vector.broadcast %cst_27 : f32 to vector<1x128xf32>
    %32 = arith.cmpf ogt, %30, %31 : vector<1x128xf32>
    %33 = vector.extract_strided_slice %28 {offsets = [0, 0], sizes = [1, 128], strides = [1, 1]} : vector<2x128xf32> to vector<1x128xf32>
    %cst_28 = arith.constant -1.000000e+09 : f32
    %34 = vector.broadcast %cst_28 : f32 to vector<1x128xf32>
    %35 = arith.select %32, %33, %34 : vector<1x128xi1>, vector<1x128xf32>
    %c0_29 = arith.constant 0 : index
    %c0_30 = arith.constant 0 : index
    %c0_31 = arith.constant 0 : index
    %36 = vector.load %arg11[%c0_29, %c0_30, %c0_31] : memref<1x1x128xf32, #tpu.memory_space<vmem>>, vector<1x1x128xf32>
    %37 = vector.shape_cast %36 : vector<1x1x128xf32> to vector<1x128xf32>
    %38 = vector.shape_cast %35 : vector<1x128xf32> to vector<1x1x128xf32>
    tpu.vector_store %arg11[%c0_29, %c0_30, %c0_31], %38 {strides = array<i32>} : memref<1x1x128xf32, #tpu.memory_space<vmem>>, vector<1x1x128xf32>,
    %39 = vector.extract_strided_slice %28 {offsets = [1, 0], sizes = [1, 128], strides = [1, 1]} : vector<2x128xf32> to vector<1x128xf32>
    %40 = arith.mulf %39, %1 : vector<1x128xf32>
    %cst_32 = arith.constant dense<0.000000e+00> : vector<1xf32>
    %41 = vector.multi_reduction <add>, %40, %cst_32 [1] : vector<1x128xf32> to vector<1xf32>
    %42 = vector.shape_cast %41 : vector<1xf32> to vector<1x1xf32>
    %c0_33 = arith.constant 0 : index
    %c0_34 = arith.constant 0 : index
    %c0_35 = arith.constant 0 : index
    %43 = vector.load %arg12[%c0_33, %c0_34, %c0_35] : memref<1x1x1xf32, #tpu.memory_space<vmem>>, vector<1x1x1xf32>
    %44 = vector.shape_cast %43 : vector<1x1x1xf32> to vector<1x1xf32>
    %45 = vector.shape_cast %42 : vector<1x1xf32> to vector<1x1x1xf32>
    tpu.vector_store %arg12[%c0_33, %c0_34, %c0_35], %45 {strides = array<i32>} : memref<1x1x1xf32, #tpu.memory_space<vmem>>, vector<1x1x1xf32>,
    return
  }
  func.func @transform_0(%arg0: i32) -> (i32, i32, i32) {
    %c0_i32 = arith.constant 0 : i32
    %c0_i32_0 = arith.constant 0 : i32
    %c0_i32_1 = arith.constant 0 : i32
    return %arg0, %c0_i32, %c0_i32_0 : i32, i32, i32
  }
  func.func @transform_1(%arg0: i32) -> (i32, i32, i32) {
    %c0_i32 = arith.constant 0 : i32
    %c0_i32_0 = arith.constant 0 : i32
    %c0_i32_1 = arith.constant 0 : i32
    return %arg0, %c0_i32, %c0_i32_0 : i32, i32, i32
  }
  func.func @transform_2(%arg0: i32) -> (i32, i32) {
    %c0_i32 = arith.constant 0 : i32
    %c0_i32_0 = arith.constant 0 : i32
    %c0_i32_1 = arith.constant 0 : i32
    return %c0_i32, %c0_i32_0 : i32, i32
  }
  func.func @transform_3(%arg0: i32) -> (i32, i32) {
    %c0_i32 = arith.constant 0 : i32
    %c0_i32_0 = arith.constant 0 : i32
    %c0_i32_1 = arith.constant 0 : i32
    return %c0_i32, %c0_i32_0 : i32, i32
  }
  func.func @transform_4(%arg0: i32) -> (i32, i32) {
    %c0_i32 = arith.constant 0 : i32
    %c0_i32_0 = arith.constant 0 : i32
    %c0_i32_1 = arith.constant 0 : i32
    return %c0_i32, %c0_i32_0 : i32, i32
  }
  func.func @transform_5(%arg0: i32) -> (i32, i32) {
    %c0_i32 = arith.constant 0 : i32
    %c0_i32_0 = arith.constant 0 : i32
    %c0_i32_1 = arith.constant 0 : i32
    return %c0_i32, %c0_i32_0 : i32, i32
  }
  func.func @transform_6(%arg0: i32) -> (i32, i32) {
    %c0_i32 = arith.constant 0 : i32
    %c0_i32_0 = arith.constant 0 : i32
    %c0_i32_1 = arith.constant 0 : i32
    return %c0_i32, %c0_i32_0 : i32, i32
  }
  func.func @transform_7(%arg0: i32) -> (i32, i32) {
    %c0_i32 = arith.constant 0 : i32
    %c0_i32_0 = arith.constant 0 : i32
    %c0_i32_1 = arith.constant 0 : i32
    return %c0_i32, %c0_i32_0 : i32, i32
  }
  func.func @transform_8(%arg0: i32) -> (i32, i32) {
    %c0_i32 = arith.constant 0 : i32
    %c0_i32_0 = arith.constant 0 : i32
    %c0_i32_1 = arith.constant 0 : i32
    return %c0_i32, %c0_i32_0 : i32, i32
  }
  func.func @transform_9(%arg0: i32) -> (i32, i32) {
    %c0_i32 = arith.constant 0 : i32
    %c0_i32_0 = arith.constant 0 : i32
    %c0_i32_1 = arith.constant 0 : i32
    return %c0_i32, %c0_i32_0 : i32, i32
  }
  func.func @transform_10(%arg0: i32) -> (i32, i32, i32) {
    %c0_i32 = arith.constant 0 : i32
    %c0_i32_0 = arith.constant 0 : i32
    %c0_i32_1 = arith.constant 0 : i32
    return %arg0, %c0_i32, %c0_i32_0 : i32, i32, i32
  }
  func.func @transform_11(%arg0: i32) -> (i32, i32, i32) {
    %c0_i32 = arith.constant 0 : i32
    %c0_i32_0 = arith.constant 0 : i32
    %c0_i32_1 = arith.constant 0 : i32
    return %arg0, %c0_i32, %c0_i32_0 : i32, i32, i32
  }
}

</mosaic_0001>

<llo_original>
// kernel: actor_critic_forward.1
$region0: #{actor_critic_forward.1}
  #allocation0 [shape = 'u32[]', space=smem, size = 0x4, offset = 0x4, fixed_abs, tag = 'smem constant byte address 0x4 - core index']
  #allocation1 [shape = 'u32[72,128]{1,0:T(1,128)}', space=vmem, size = 0x9000, scoped, tag = 'internal scratch']
  %s0 = inlined_call_operand.vmem [shape: bf16[2,4,128], index: 0, kind: input, shape index: {}]
  %s1 = inlined_call_operand.vmem [shape: f32[2,1,128], index: 1, kind: input, shape index: {}]
  %s2 = inlined_call_operand.vmem [shape: bf16[128,128], index: 2, kind: input, shape index: {}]
  %s3 = inlined_call_operand.vmem [shape: f32[1,128], index: 3, kind: input, shape index: {}]
  %s4 = inlined_call_operand.vmem [shape: bf16[32,4], index: 4, kind: input, shape index: {}]
  %s5 = inlined_call_operand.vmem [shape: f32[32,1], index: 5, kind: input, shape index: {}]
  %s6 = inlined_call_operand.vmem [shape: bf16[32,32], index: 6, kind: input, shape index: {}]
  %s7 = inlined_call_operand.vmem [shape: f32[32,1], index: 7, kind: input, shape index: {}]
  %s8 = inlined_call_operand.vmem [shape: bf16[2,32], index: 8, kind: input, shape index: {}]
  %s9 = inlined_call_operand.vmem [shape: f32[2,1], index: 9, kind: input, shape index: {}]
  %s10 = inlined_call_operand.hbm [shape: f32[2,1,128], index: 10, kind: output, shape index: {0}]
  %s11 = inlined_call_operand.vmem [shape: f32[2,1,1], index: 11, kind: output, shape index: {1}]
  %12 = xla_tuple %s10, %s11
  %s13 = sld [smem:[#allocation0]]
  $region81: #{actor_critic_forward.1} parent=0
    _
  %s15 = ssub.s32 1, %s13
  %s16 = scalar_select 0, %s15, %s13
  $region1: #{actor_critic_forward.1} parent=0
    #allocation2 [shape = 'u8[1024]{0}', space=vmem, size = 0x400, scoped, tag = 'output window, operand 0']
    #allocation3 [shape = 's32[2]{0}', space=sflag, size = 0x8, scoped, tag = 'scoped memory for actor_critic_forward.1']
    %17 = vsyncpa [#allocation3], 0
    %s18 = scalar_lea.sflag [#allocation3], 1
    %19 = vsyncpa %s18, 0
    loop: start=0, step=1, limit=4
    $region2: #{actor_critic_forward.1} parent=1 // loop_pre_header
      _
    $region3: #{actor_critic_forward.1} parent=1 // loop_header
      %s21 = sphi 0, %s25
      %p22 = scmp.ge.s32.totalorder %s21, 4
      %s31 = sphi 0, %s33
      %s34 = sphi 0, %s31
      %s35 = sphi 0, %s34
      %s51 = sphi 0, %s35
      %s57 = sphi 0, %s59
      %s60 = sphi 0, %s57
      %s61 = sphi 0, %s60
      %s77 = sphi 0, %s61
      %s81 = sphi 0, %s81
      %s83 = sphi 0, %s81
      %s84 = sphi 0, %s83
      %s98 = sphi 0, %s84
      %s102 = sphi 0, %s102
      %s104 = sphi 0, %s102
      %s105 = sphi 0, %s104
      %s119 = sphi 0, %s105
      %s123 = sphi 0, %s123
      %s125 = sphi 0, %s123
      %s126 = sphi 0, %s125
      %s140 = sphi 0, %s126
      %s144 = sphi 0, %s144
      %s146 = sphi 0, %s144
      %s147 = sphi 0, %s146
      %s161 = sphi 0, %s147
      %s165 = sphi 0, %s165
      %s167 = sphi 0, %s165
      %s168 = sphi 0, %s167
      %s182 = sphi 0, %s168
      %s186 = sphi 0, %s186
      %s188 = sphi 0, %s186
      %s189 = sphi 0, %s188
      %s203 = sphi 0, %s189
      %s207 = sphi 0, %s207
      %s209 = sphi 0, %s207
      %s210 = sphi 0, %s209
      %s224 = sphi 0, %s210
      %s228 = sphi 0, %s228
      %s230 = sphi 0, %s228
      %s231 = sphi 0, %s230
      %s245 = sphi 0, %s231
      %s251 = sphi 0, %s253
      %s254 = sphi 0, %s251
      %s255 = sphi 0, %s254
      %s271 = sphi 0, %s255
      %s277 = sphi 0, %s279
      %s280 = sphi 0, %s277
      %s281 = sphi 0, %s280
      %s297 = sphi 0, %s281
    $region4: #{actor_critic_forward.1} parent=1 // loop_header_branch
      %24 = sbr.rel (%p22) target = $region8
    $region5: #{actor_critic_forward.1} parent=1 // loop_body
      %s26 = ssub.s32 %s21, 1
      %s27 = ssub.s32 %s21, 2
      %s28 = sadd.s32 %s21, 1
      %s29 = ssub.s32 %s21, %s28
      %p30 = scmp.eq.s32.totalorder %s29, 0
      %s32 = sadd.s32 %s31, 1
      %s33 = scalar_select %p30, %s31, %s32
      %p36 = pneg %p30
      %p37 = scmp.eq.s32.totalorder %s21, 1
      %p38 = por %p36, %p37
      %p39 = scmp.ne.s32.totalorder %s31, %s34
      %p40 = scmp.eq.s32.totalorder %s21, 0
      %p41 = por %p39, %p40
      %p42 = scmp.ne.s32.totalorder %s31, %s34
      %p43 = scmp.eq.s32.totalorder %s26, 1
      %p44 = por %p42, %p43
      %p45 = scmp.ne.s32.totalorder %s34, %s35
      %p46 = scmp.eq.s32.totalorder %s26, 0
      %p47 = por %p45, %p46
      %p48 = scmp.ne.s32.totalorder %s34, %s35
      %p49 = scmp.eq.s32.totalorder %s27, 1
      %p50 = por %p48, %p49
      %p52 = scmp.ne.s32.totalorder %s35, %s51
      %p53 = scmp.eq.s32.totalorder %s27, 0
      %p54 = por %p52, %p53
      %s55 = ssub.s32 %s21, %s28
      %p56 = scmp.eq.s32.totalorder %s55, 0
      %s58 = sadd.s32 %s57, 1
      %s59 = scalar_select %p56, %s57, %s58
      %p62 = pneg %p56
      %p63 = scmp.eq.s32.totalorder %s21, 1
      %p64 = por %p62, %p63
      %p65 = scmp.ne.s32.totalorder %s57, %s60
      %p66 = scmp.eq.s32.totalorder %s21, 0
      %p67 = por %p65, %p66
      %p68 = scmp.ne.s32.totalorder %s57, %s60
      %p69 = scmp.eq.s32.totalorder %s26, 1
      %p70 = por %p68, %p69
      %p71 = scmp.ne.s32.totalorder %s60, %s61
      %p72 = scmp.eq.s32.totalorder %s26, 0
      %p73 = por %p71, %p72
      %p74 = scmp.ne.s32.totalorder %s60, %s61
      %p75 = scmp.eq.s32.totalorder %s27, 1
      %p76 = por %p74, %p75
      %p78 = scmp.ne.s32.totalorder %s61, %s77
      %p79 = scmp.eq.s32.totalorder %s27, 0
      %p80 = por %p78, %p79
      %s82 = sadd.s32 %s81, 1
      %p85 = scmp.eq.s32.totalorder %s21, 1
      %p86 = scmp.ne.s32.totalorder %s81, %s83
      %p87 = scmp.eq.s32.totalorder %s21, 0
      %p88 = por %p86, %p87
      %p89 = scmp.ne.s32.totalorder %s81, %s83
      %p90 = scmp.eq.s32.totalorder %s26, 1
      %p91 = por %p89, %p90
      %p92 = scmp.ne.s32.totalorder %s83, %s84
      %p93 = scmp.eq.s32.totalorder %s26, 0
      %p94 = por %p92, %p93
      %p95 = scmp.ne.s32.totalorder %s83, %s84
      %p96 = scmp.eq.s32.totalorder %s27, 1
      %p97 = por %p95, %p96
      %p99 = scmp.ne.s32.totalorder %s84, %s98
      %p100 = scmp.eq.s32.totalorder %s27, 0
      %p101 = por %p99, %p100
      %s103 = sadd.s32 %s102, 1
      %p106 = scmp.eq.s32.totalorder %s21, 1
      %p107 = scmp.ne.s32.totalorder %s102, %s104
      %p108 = scmp.eq.s32.totalorder %s21, 0
      %p109 = por %p107, %p108
      %p110 = scmp.ne.s32.totalorder %s102, %s104
      %p111 = scmp.eq.s32.totalorder %s26, 1
      %p112 = por %p110, %p111
      %p113 = scmp.ne.s32.totalorder %s104, %s105
      %p114 = scmp.eq.s32.totalorder %s26, 0
      %p115 = por %p113, %p114
      %p116 = scmp.ne.s32.totalorder %s104, %s105
      %p117 = scmp.eq.s32.totalorder %s27, 1
      %p118 = por %p116, %p117
      %p120 = scmp.ne.s32.totalorder %s105, %s119
      %p121 = scmp.eq.s32.totalorder %s27, 0
      %p122 = por %p120, %p121
      %s124 = sadd.s32 %s123, 1
      %p127 = scmp.eq.s32.totalorder %s21, 1
      %p128 = scmp.ne.s32.totalorder %s123, %s125
      %p129 = scmp.eq.s32.totalorder %s21, 0
      %p130 = por %p128, %p129
      %p131 = scmp.ne.s32.totalorder %s123, %s125
      %p132 = scmp.eq.s32.totalorder %s26, 1
      %p133 = por %p131, %p132
      %p134 = scmp.ne.s32.totalorder %s125, %s126
      %p135 = scmp.eq.s32.totalorder %s26, 0
      %p136 = por %p134, %p135
      %p137 = scmp.ne.s32.totalorder %s125, %s126
      %p138 = scmp.eq.s32.totalorder %s27, 1
      %p139 = por %p137, %p138
      %p141 = scmp.ne.s32.totalorder %s126, %s140
      %p142 = scmp.eq.s32.totalorder %s27, 0
      %p143 = por %p141, %p142
      %s145 = sadd.s32 %s144, 1
      %p148 = scmp.eq.s32.totalorder %s21, 1
      %p149 = scmp.ne.s32.totalorder %s144, %s146
      %p150 = scmp.eq.s32.totalorder %s21, 0
      %p151 = por %p149, %p150
      %p152 = scmp.ne.s32.totalorder %s144, %s146
      %p153 = scmp.eq.s32.totalorder %s26, 1
      %p154 = por %p152, %p153
      %p155 = scmp.ne.s32.totalorder %s146, %s147
      %p156 = scmp.eq.s32.totalorder %s26, 0
      %p157 = por %p155, %p156
      %p158 = scmp.ne.s32.totalorder %s146, %s147
      %p159 = scmp.eq.s32.totalorder %s27, 1
      %p160 = por %p158, %p159
      %p162 = scmp.ne.s32.totalorder %s147, %s161
      %p163 = scmp.eq.s32.totalorder %s27, 0
      %p164 = por %p162, %p163
      %s166 = sadd.s32 %s165, 1
      %p169 = scmp.eq.s32.totalorder %s21, 1
      %p170 = scmp.ne.s32.totalorder %s165, %s167
      %p171 = scmp.eq.s32.totalorder %s21, 0
      %p172 = por %p170, %p171
      %p173 = scmp.ne.s32.totalorder %s165, %s167
      %p174 = scmp.eq.s32.totalorder %s26, 1
      %p175 = por %p173, %p174
      %p176 = scmp.ne.s32.totalorder %s167, %s168
      %p177 = scmp.eq.s32.totalorder %s26, 0
      %p178 = por %p176, %p177
      %p179 = scmp.ne.s32.totalorder %s167, %s168
      %p180 = scmp.eq.s32.totalorder %s27, 1
      %p181 = por %p179, %p180
      %p183 = scmp.ne.s32.totalorder %s168, %s182
      %p184 = scmp.eq.s32.totalorder %s27, 0
      %p185 = por %p183, %p184
      %s187 = sadd.s32 %s186, 1
      %p190 = scmp.eq.s32.totalorder %s21, 1
      %p191 = scmp.ne.s32.totalorder %s186, %s188
      %p192 = scmp.eq.s32.totalorder %s21, 0
      %p193 = por %p191, %p192
      %p194 = scmp.ne.s32.totalorder %s186, %s188
      %p195 = scmp.eq.s32.totalorder %s26, 1
      %p196 = por %p194, %p195
      %p197 = scmp.ne.s32.totalorder %s188, %s189
      %p198 = scmp.eq.s32.totalorder %s26, 0
      %p199 = por %p197, %p198
      %p200 = scmp.ne.s32.totalorder %s188, %s189
      %p201 = scmp.eq.s32.totalorder %s27, 1
      %p202 = por %p200, %p201
      %p204 = scmp.ne.s32.totalorder %s189, %s203
      %p205 = scmp.eq.s32.totalorder %s27, 0
      %p206 = por %p204, %p205
      %s208 = sadd.s32 %s207, 1
      %p211 = scmp.eq.s32.totalorder %s21, 1
      %p212 = scmp.ne.s32.totalorder %s207, %s209
      %p213 = scmp.eq.s32.totalorder %s21, 0
      %p214 = por %p212, %p213
      %p215 = scmp.ne.s32.totalorder %s207, %s209
      %p216 = scmp.eq.s32.totalorder %s26, 1
      %p217 = por %p215, %p216
      %p218 = scmp.ne.s32.totalorder %s209, %s210
      %p219 = scmp.eq.s32.totalorder %s26, 0
      %p220 = por %p218, %p219
      %p221 = scmp.ne.s32.totalorder %s209, %s210
      %p222 = scmp.eq.s32.totalorder %s27, 1
      %p223 = por %p221, %p222
      %p225 = scmp.ne.s32.totalorder %s210, %s224
      %p226 = scmp.eq.s32.totalorder %s27, 0
      %p227 = por %p225, %p226
      %s229 = sadd.s32 %s228, 1
      %p232 = scmp.eq.s32.totalorder %s21, 1
      %p233 = scmp.ne.s32.totalorder %s228, %s230
      %p234 = scmp.eq.s32.totalorder %s21, 0
      %p235 = por %p233, %p234
      %p236 = scmp.ne.s32.totalorder %s228, %s230
      %p237 = scmp.eq.s32.totalorder %s26, 1
      %p238 = por %p236, %p237
      %p239 = scmp.ne.s32.totalorder %s230, %s231
      %p240 = scmp.eq.s32.totalorder %s26, 0
      %p241 = por %p239, %p240
      %p242 = scmp.ne.s32.totalorder %s230, %s231
      %p243 = scmp.eq.s32.totalorder %s27, 1
      %p244 = por %p242, %p243
      %p246 = scmp.ne.s32.totalorder %s231, %s245
      %p247 = scmp.eq.s32.totalorder %s27, 0
      %p248 = por %p246, %p247
      %s249 = ssub.s32 %s21, %s28
      %p250 = scmp.eq.s32.totalorder %s249, 0
      %s252 = sadd.s32 %s251, 1
      %s253 = scalar_select %p250, %s251, %s252
      %p256 = pneg %p250
      %p257 = scmp.eq.s32.totalorder %s21, 1
      %p258 = por %p256, %p257
      %p259 = scmp.ne.s32.totalorder %s251, %s254
      %p260 = scmp.eq.s32.totalorder %s21, 0
      %p261 = por %p259, %p260
      %p262 = scmp.ne.s32.totalorder %s251, %s254
      %p263 = scmp.eq.s32.totalorder %s26, 1
      %p264 = por %p262, %p263
      %p265 = scmp.ne.s32.totalorder %s254, %s255
      %p266 = scmp.eq.s32.totalorder %s26, 0
      %p267 = por %p265, %p266
      %p268 = scmp.ne.s32.totalorder %s254, %s255
      %p269 = scmp.eq.s32.totalorder %s27, 1
      %p270 = por %p268, %p269
      %p272 = scmp.ne.s32.totalorder %s255, %s271
      %p273 = scmp.eq.s32.totalorder %s27, 0
      %p274 = por %p272, %p273
      %s275 = ssub.s32 %s21, %s28
      %p276 = scmp.eq.s32.totalorder %s275, 0
      %s278 = sadd.s32 %s277, 1
      %s279 = scalar_select %p276, %s277, %s278
      %p282 = pneg %p276
      %p283 = scmp.eq.s32.totalorder %s21, 1
      %p284 = por %p282, %p283
      %p285 = scmp.ne.s32.totalorder %s277, %s280
      %p286 = scmp.eq.s32.totalorder %s21, 0
      %p287 = por %p285, %p286
      %p288 = scmp.ne.s32.totalorder %s277, %s280
      %p289 = scmp.eq.s32.totalorder %s26, 1
      %p290 = por %p288, %p289
      %p291 = scmp.ne.s32.totalorder %s280, %s281
      %p292 = scmp.eq.s32.totalorder %s26, 0
      %p293 = por %p291, %p292
      %p294 = scmp.ne.s32.totalorder %s280, %s281
      %p295 = scmp.eq.s32.totalorder %s27, 1
      %p296 = por %p294, %p295
      %p298 = scmp.ne.s32.totalorder %s281, %s297
      %p299 = scmp.eq.s32.totalorder %s27, 0
      %p300 = por %p298, %p299
      %p301 = scmp.le.s32.totalorder 1, %s21
      %p302 = scmp.lt.s32.totalorder %s21, 3
      %p303 = pnand %p301, %p302
      %p304 = pneg %p303
      // Predicated region
      $region9: #{actor_critic_forward.1} parent=5 // pred_check
        _
      $region10: #{actor_critic_forward.1} parent=5 // pred_check_branch
        %306 = sbr.rel (%p303) target = $region12
      $region11: #{actor_critic_forward.1} parent=5 // pred_region
        %s307 = ssub.s32 %s21, 1
        // Predicated region
        $region13: #{actor_critic_forward.1} parent=11 // pred_check
          %p308 = pneg %p94
        $region14: #{actor_critic_forward.1} parent=11 // pred_check_branch
          %310 = sbr.rel (%p308) target = $region16
        $region15: #{actor_critic_forward.1} parent=11 // pred_region
          _
        $region16: #{actor_critic_forward.1} parent=11 // pred_fallthru
          _
        // Predicated region
        $region17: #{actor_critic_forward.1} parent=11 // pred_check
          %p311 = pneg %p115
        $region18: #{actor_critic_forward.1} parent=11 // pred_check_branch
          %313 = sbr.rel (%p311) target = $region20
        $region19: #{actor_critic_forward.1} parent=11 // pred_region
          _
        $region20: #{actor_critic_forward.1} parent=11 // pred_fallthru
          _
        // Predicated region
        $region21: #{actor_critic_forward.1} parent=11 // pred_check
          %p314 = pneg %p136
        $region22: #{actor_critic_forward.1} parent=11 // pred_check_branch
          %316 = sbr.rel (%p314) target = $region24
        $region23: #{actor_critic_forward.1} parent=11 // pred_region
          _
        $region24: #{actor_critic_forward.1} parent=11 // pred_fallthru
          _
        // Predicated region
        $region25: #{actor_critic_forward.1} parent=11 // pred_check
          %p317 = pneg %p157
        $region26: #{actor_critic_forward.1} parent=11 // pred_check_branch
          %319 = sbr.rel (%p317) target = $region28
        $region27: #{actor_critic_forward.1} parent=11 // pred_region
          _
        $region28: #{actor_critic_forward.1} parent=11 // pred_fallthru
          _
        // Predicated region
        $region29: #{actor_critic_forward.1} parent=11 // pred_check
          %p320 = pneg %p178
        $region30: #{actor_critic_forward.1} parent=11 // pred_check_branch
          %322 = sbr.rel (%p320) target = $region32
        $region31: #{actor_critic_forward.1} parent=11 // pred_region
          _
        $region32: #{actor_critic_forward.1} parent=11 // pred_fallthru
          _
        // Predicated region
        $region33: #{actor_critic_forward.1} parent=11 // pred_check
          %p323 = pneg %p199
        $region34: #{actor_critic_forward.1} parent=11 // pred_check_branch
          %325 = sbr.rel (%p323) target = $region36
        $region35: #{actor_critic_forward.1} parent=11 // pred_region
          _
        $region36: #{actor_critic_forward.1} parent=11 // pred_fallthru
          _
        // Predicated region
        $region37: #{actor_critic_forward.1} parent=11 // pred_check
          %p326 = pneg %p220
        $region38: #{actor_critic_forward.1} parent=11 // pred_check_branch
          %328 = sbr.rel (%p326) target = $region40
        $region39: #{actor_critic_forward.1} parent=11 // pred_region
          _
        $region40: #{actor_critic_forward.1} parent=11 // pred_fallthru
          _
        // Predicated region
        $region41: #{actor_critic_forward.1} parent=11 // pred_check
          %p329 = pneg %p241
        $region42: #{actor_critic_forward.1} parent=11 // pred_check_branch
          %331 = sbr.rel (%p329) target = $region44
        $region43: #{actor_critic_forward.1} parent=11 // pred_region
          _
        $region44: #{actor_critic_forward.1} parent=11 // pred_fallthru
          _
      $region12: #{actor_critic_forward.1} parent=5 // pred_fallthru
        _
      %p332 = scmp.lt.s32.totalorder %s21, 2
      // Predicated region
      $region45: #{actor_critic_forward.1} parent=5 // pred_check
        %p333 = pneg %p332
      $region46: #{actor_critic_forward.1} parent=5 // pred_check_branch
        %335 = sbr.rel (%p333) target = $region48
      $region47: #{actor_critic_forward.1} parent=5 // pred_region
        // Predicated region
        $region49: #{actor_critic_forward.1} parent=47 // pred_check
          %p336 = pneg %p41
        $region50: #{actor_critic_forward.1} parent=47 // pred_check_branch
          %338 = sbr.rel (%p336) target = $region52
        $region51: #{actor_critic_forward.1} parent=47 // pred_region
          %p339 = scmp.lt.s32.totalorder %s21, 1
          %s340 = scalar_select %p339, %s21, 1
          %s341 = smul.addr %s340, 2
          %s342 = scalar_lea.vmem %s0, %s341
        $region52: #{actor_critic_forward.1} parent=47 // pred_fallthru
          _
        // Predicated region
        $region53: #{actor_critic_forward.1} parent=47 // pred_check
          %p343 = pneg %p67
        $region54: #{actor_critic_forward.1} parent=47 // pred_check_branch
          %345 = sbr.rel (%p343) target = $region56
        $region55: #{actor_critic_forward.1} parent=47 // pred_region
          %p346 = scmp.lt.s32.totalorder %s21, 1
          %s347 = scalar_select %p346, %s21, 1
          %s348 = scalar_lea.vmem %s1, %s347
        $region56: #{actor_critic_forward.1} parent=47 // pred_fallthru
          _
      $region48: #{actor_critic_forward.1} parent=5 // pred_fallthru
        _
      %p349 = scmp.le.s32.totalorder 1, %s21
      %p350 = scmp.lt.s32.totalorder %s21, 3
      %p351 = pnand %p349, %p350
      %p352 = pneg %p351
      // Predicated region
      $region57: #{actor_critic_forward.1} parent=5 // pred_check
        _
      $region58: #{actor_critic_forward.1} parent=5 // pred_check_branch
        %354 = sbr.rel (%p351) target = $region60
      $region59: #{actor_critic_forward.1} parent=5 // pred_region
        %s355 = ssub.s32 %s21, 1
        %p356 = scmp.lt.s32.totalorder %s26, 1
        %s357 = scalar_select %p356, %s26, 1
        %s358 = smul.addr %s357, 2
        %s359 = scalar_lea.vmem %s0, %s358
        %p360 = pneg %p47
        %p361 = pneg %p44
        %p362 = scmp.lt.s32.totalorder %s26, 1
        %s363 = scalar_select %p362, %s26, 1
        %s364 = scalar_lea.vmem %s1, %s363
        %p365 = pneg %p73
        %p366 = pneg %p70
        %p367 = pneg %p94
        %p368 = pneg %p91
        %p369 = pneg %p115
        %p370 = pneg %p112
        %p371 = pneg %p136
        %p372 = pneg %p133
        %p373 = pneg %p157
        %p374 = pneg %p154
        %p375 = pneg %p178
        %p376 = pneg %p175
        %p377 = pneg %p199
        %p378 = pneg %p196
        %p379 = pneg %p220
        %p380 = pneg %p217
        %p381 = pneg %p241
        %p382 = pneg %p238
        %p383 = pneg %p267
        %p384 = pneg %p264
        %s385 = sand.u32 %s254, 1
        %s386 = scalar_lea.sflag [#allocation3], %s385
        %s387 = sand.u32 %s254, 1
        %s388 = scalar_lea.vmem [#allocation2], %s387
        %p389 = pneg %p293
        %p390 = pneg %p290
        %p391 = scmp.lt.s32.totalorder %s26, 1
        %s392 = scalar_select %p391, %s26, 1
        %s393 = scalar_lea.vmem %s11, %s392
        %p394 = scmp.lt.s32.totalorder %s26, 1
        %s395 = scalar_select %p394, %s26, 1
        %s396 = smul.addr %s395, 2
        %s397 = scalar_lea.vmem %s0, %s396
        %p398 = scmp.lt.s32.totalorder %s26, 1
        %s399 = scalar_select %p398, %s26, 1
        %s400 = scalar_lea.vmem %s1, %s399
        %p401 = scmp.lt.s32.totalorder %s26, 1
        %s402 = scalar_select %p401, %s26, 1
        %s403 = scalar_lea.vmem %s11, %s402
        %v405 = vld [vmem:[%s2] sm:$0xf]
        %v406 = vld [vmem:[%s2 + $0x4] sm:$0xf]
        %v407 = vld [vmem:[%s2 + $0x8] sm:$0xf]
        %v408 = vld [vmem:[%s2 + $0xc] sm:$0xf]
        %v409 = vld [vmem:[%s2 + $0x10] sm:$0xf]
        %v410 = vld [vmem:[%s2 + $0x14] sm:$0xf]
        %v411 = vld [vmem:[%s2 + $0x18] sm:$0xf]
        %v412 = vld [vmem:[%s2 + $0x1c] sm:$0xf]
        %v413 = vld [vmem:[%s2 + $0x20] sm:$0xf]
        %v414 = vld [vmem:[%s2 + $0x24] sm:$0xf]
        %v415 = vld [vmem:[%s2 + $0x28] sm:$0xf]
        %v416 = vld [vmem:[%s2 + $0x2c] sm:$0xf]
        %v417 = vld [vmem:[%s2 + $0x30] sm:$0xf]
        %v418 = vld [vmem:[%s2 + $0x34] sm:$0xf]
        %v419 = vld [vmem:[%s2 + $0x38] sm:$0xf]
        %v420 = vld [vmem:[%s2 + $0x3c] sm:$0xf]
        %v421 = vld [vmem:[%s3] sm:$0x1]
        %v422 = vld [vmem:[%s4] sm:$0xf]
        %v423 = vld [vmem:[%s4 + $0x4] sm:$0xf]
        %v424 = vld [vmem:[%s4 + $0x8] sm:$0xf]
        %v425 = vld [vmem:[%s4 + $0xc] sm:$0xf]
        %v426 = vld [vmem:[%s5] sm:$0xff]
        %v427 = vld [vmem:[%s5 + $0x8] sm:$0xff]
        %v428 = vld [vmem:[%s5 + $0x10] sm:$0xff]
        %v429 = vld [vmem:[%s5 + $0x18] sm:$0xff]
        %v430 = vld [vmem:[%s6] sm:$0xf]
        %v431 = vld [vmem:[%s6 + $0x4] sm:$0xf]
        %v432 = vld [vmem:[%s6 + $0x8] sm:$0xf]
        %v433 = vld [vmem:[%s6 + $0xc] sm:$0xf]
        %v434 = vld [vmem:[%s7] sm:$0xff]
        %v435 = vld [vmem:[%s7 + $0x8] sm:$0xff]
        %v436 = vld [vmem:[%s7 + $0x10] sm:$0xff]
        %v437 = vld [vmem:[%s7 + $0x18] sm:$0xff]
        %v438 = vld [vmem:[%s8] sm:$0x1]
        %v439 = vld [vmem:[%s9] sm:$0x3]
        %v440 = vld [vmem:[%s397] sm:$0x3]
        %v457 = vunpack.c.l.b16 %v405
        %v458 = vunpack.c.l.b16 %v406
        %v459 = vunpack.c.l.b16 %v407
        %v460 = vunpack.c.l.b16 %v408
        %v461 = vunpack.c.l.b16 %v409
        %v462 = vunpack.c.l.b16 %v410
        %v463 = vunpack.c.l.b16 %v411
        %v464 = vunpack.c.l.b16 %v412
        %v465 = vunpack.c.l.b16 %v413
        %v466 = vunpack.c.l.b16 %v414
        %v467 = vunpack.c.l.b16 %v415
        %v468 = vunpack.c.l.b16 %v416
        %v469 = vunpack.c.l.b16 %v417
        %v470 = vunpack.c.l.b16 %v418
        %v471 = vunpack.c.l.b16 %v419
        %v472 = vunpack.c.l.b16 %v420
        %v473 = vpack.c.b16 %v458, %v457
        %v474 = vpack.c.b16 %v460, %v459
        %v475 = vpack.c.b16 %v462, %v461
        %v476 = vpack.c.b16 %v464, %v463
        %v477 = vpack.c.b16 %v466, %v465
        %v478 = vpack.c.b16 %v468, %v467
        %v479 = vpack.c.b16 %v470, %v469
        %v480 = vpack.c.b16 %v472, %v471
        %489 = vmatpush.bf16.msra.mxu0 %v480
        %490 = vmatpush.bf16.msra.mxu0 %v479
        %491 = vmatpush.bf16.msra.mxu0 %v478
        %492 = vmatpush.bf16.msra.mxu0 %v477
        %493 = vmatpush.bf16.msra.mxu0 %v476
        %494 = vmatpush.bf16.msra.mxu0 %v475
        %495 = vmatpush.bf16.msra.mxu0 %v474
        %496 = vmatpush.bf16.msra.mxu0 %v473
        %497 = vmatmul.bf16.gmra.mxu0 %v440
        %v498 = vpop.f32.mrf.mxu0
        %v499 = vadd.f32 0.0, %v498
        %v500 = vpop.f32.mrf.mxu0
        %501 = vdwg.mxu0
        %v502 = vpack.c.bf16 %v499, %v499
        %504 = vset.pattern.permute.xlu0 0
        %505 = vperm.xlu0 %504, %v426
        %v506 = vpop.permute.xlu0 %505
        %509 = vset.pattern.permute.xlu0 0
        %510 = vperm.xlu0 %509, %v427
        %v511 = vpop.permute.xlu0 %510
        %514 = vset.pattern.permute.xlu0 0
        %515 = vperm.xlu0 %514, %v428
        %v516 = vpop.permute.xlu0 %515
        %519 = vset.pattern.permute.xlu0 0
        %520 = vperm.xlu0 %519, %v429
        %v521 = vpop.permute.xlu0 %520
        %v527 = vunpack.c.l.b16 %v422
        %v528 = vunpack.c.l.b16 %v423
        %v529 = vunpack.c.l.b16 %v424
        %v530 = vunpack.c.l.b16 %v425
        %v531 = vpack.c.b16 %v528, %v527
        %v532 = vpack.c.b16 %v530, %v529
        %vm533 = vcmask 31744
        %v535 = vsel %vm533, %v531, 0
        %v538 = vsel %vm533, %v532, 0
        %vm540 = vcmask 1041408
        %v542 = vsel %vm540, %v502, 0
        %544 = vmatpush.bf16.msra.mxu0 0
        %545 = vmatpush.bf16.msra.mxu0 0
        %546 = vmatpush.bf16.msra.mxu0 0
        %547 = vmatpush.bf16.msra.mxu0 0
        %548 = vmatpush.bf16.msra.mxu0 0
        %549 = vmatpush.bf16.msra.mxu0 0
        %550 = vmatpush.bf16.msra.mxu0 0
        %551 = vmatpush.bf16.msra.mxu0 %v542
        %552 = vmatmul.bf16.gmra.mxu0 %v535
        %v553 = vpop.f32.mrf.mxu0
        %v554 = vadd.f32 %v506, %v553
        %v555 = vpop.f32.mrf.mxu0
        %v556 = vadd.f32 %v511, %v555
        %557 = vmatmul.bf16.gmra.mxu0 %v538
        %v558 = vpop.f32.mrf.mxu0
        %v559 = vadd.f32 %v516, %v558
        %v560 = vpop.f32.mrf.mxu0
        %v561 = vadd.f32 %v521, %v560
        %562 = vdwg.mxu0
        %v563 = vmax.f32 %v554, 0.0
        %v564 = vmax.f32 %v556, 0.0
        %v565 = vmax.f32 %v559, 0.0
        %v566 = vmax.f32 %v561, 0.0
        %v567 = vpack.c.bf16 %v564, %v563
        %v568 = vpack.c.bf16 %v566, %v565
        %v573 = vunpack.c.l.b16 %v430
        %v574 = vunpack.c.l.b16 %v431
        %v575 = vunpack.c.l.b16 %v432
        %v576 = vunpack.c.l.b16 %v433
        %v577 = vpack.c.b16 %v574, %v573
        %v578 = vpack.c.b16 %v576, %v575
        %vm579 = vcmask 261120
        %v581 = vsel %vm579, %v577, 0
        %v584 = vsel %vm579, %v578, 0
        %586 = vmatpush.bf16.msra.mxu0 0
        %587 = vmatpush.bf16.msra.mxu0 0
        %588 = vmatpush.bf16.msra.mxu0 0
        %589 = vmatpush.bf16.msra.mxu0 0
        %590 = vmatpush.bf16.msra.mxu0 0
        %591 = vmatpush.bf16.msra.mxu0 0
        %592 = vmatpush.bf16.msra.mxu0 %v568
        %593 = vmatpush.bf16.msra.mxu0 %v567
        %594 = vmatmul.bf16.gmra.mxu0 %v581
        %v595 = vpop.f32.mrf.mxu0
        %v596 = vadd.f32 0.0, %v595
        %v597 = vpop.f32.mrf.mxu0
        %v598 = vadd.f32 0.0, %v597
        %599 = vmatmul.bf16.gmra.mxu0 %v584
        %v600 = vpop.f32.mrf.mxu0
        %v601 = vadd.f32 0.0, %v600
        %v602 = vpop.f32.mrf.mxu0
        %v603 = vadd.f32 0.0, %v602
        %604 = vdwg.mxu0
        %v605 = vpack.c.bf16 %v598, %v596
        %v606 = vpack.c.bf16 %v603, %v601
        %608 = vset.pattern.permute.xlu0 0
        %609 = vperm.xlu0 %608, %v434
        %v610 = vpop.permute.xlu0 %609
        %613 = vset.pattern.permute.xlu0 0
        %614 = vperm.xlu0 %613, %v435
        %v615 = vpop.permute.xlu0 %614
        %618 = vset.pattern.permute.xlu0 0
        %619 = vperm.xlu0 %618, %v436
        %v620 = vpop.permute.xlu0 %619
        %623 = vset.pattern.permute.xlu0 0
        %624 = vperm.xlu0 %623, %v437
        %v625 = vpop.permute.xlu0 %624
        %627 = vmatpush.bf16.msra.mxu0 %v480
        %628 = vmatpush.bf16.msra.mxu0 %v479
        %629 = vmatpush.bf16.msra.mxu0 %v478
        %630 = vmatpush.bf16.msra.mxu0 %v477
        %631 = vmatpush.bf16.msra.mxu0 %v476
        %632 = vmatpush.bf16.msra.mxu0 %v475
        %633 = vmatpush.bf16.msra.mxu0 %v474
        %634 = vmatpush.bf16.msra.mxu0 %v473
        %635 = vmatmul.bf16.gmra.mxu0 %v605
        %v636 = vpop.f32.mrf.mxu0
        %v637 = vadd.f32 %v610, %v636
        %v638 = vpop.f32.mrf.mxu0
        %v639 = vadd.f32 %v615, %v638
        %640 = vmatmul.bf16.gmra.mxu0 %v606
        %v641 = vpop.f32.mrf.mxu0
        %v642 = vadd.f32 %v620, %v641
        %v643 = vpop.f32.mrf.mxu0
        %v644 = vadd.f32 %v625, %v643
        %645 = vdwg.mxu0
        %v646 = vmax.f32 %v637, 0.0
        %v647 = vmax.f32 %v639, 0.0
        %v648 = vmax.f32 %v642, 0.0
        %v649 = vmax.f32 %v644, 0.0
        %v650 = vpack.c.bf16 %v647, %v646
        %v651 = vpack.c.bf16 %v649, %v648
        %653 = vset.pattern.permute.xlu0 0
        %654 = vperm.xlu0 %653, %v439
        %v655 = vpop.permute.xlu0 %654
        %v658 = vsel %vm579, %v438, 0
        %660 = vmatpush.bf16.msra.mxu0 0
        %661 = vmatpush.bf16.msra.mxu0 0
        %662 = vmatpush.bf16.msra.mxu0 0
        %663 = vmatpush.bf16.msra.mxu0 0
        %664 = vmatpush.bf16.msra.mxu0 0
        %665 = vmatpush.bf16.msra.mxu0 0
        %666 = vmatpush.bf16.msra.mxu0 %v651
        %667 = vmatpush.bf16.msra.mxu0 %v650
        %668 = vmatmul.bf16.gmra.mxu0 %v658
        %v669 = vpop.f32.mrf.mxu0
        %v670 = vadd.f32 %v655, %v669
        %v671 = vpop.f32.mrf.mxu0
        %672 = vdwg.mxu0
        %v673 = vld [vmem:[%s400] sm:$0x1]
        %vm674 = vcmp.gt.f32.partialorder %v673, 0.5
        %v675 = vsel %vm674, %v670, -1e+09
        %676 = vst [vmem:[%s388] sm:$0x1] %v675
        %v678 = vperm.slane %v421, 0
        %v680 = vmul.f32 %v670, %v678
        %vm681 = vcmask 1041409
        %v682 = vsel %vm681, %v680, 0.0
        %683 = vadd.xlane.f32.xlu0 %v682
        %v684 = vpop.xlane.xlu0 %683
        %vm685 = vcmask 1025
        %686 = vst.msk [vmem:[%s403 - $0x1] sm:$0x2] %vm685, %v684
        %s687 = sand.u32 %s254, 1
        %s688 = scalar_lea.sflag [#allocation3], %s687
        %s689 = sand.u32 %s254, 1
        %s690 = scalar_lea.vmem [#allocation2], %s689
        %p691 = scmp.lt.s32.totalorder %s26, 1
        %s692 = scalar_select %p691, %s26, 1
        %s693 = scalar_lea.vmem %s11, %s692
        // Predicated region
        $region61: #{actor_critic_forward.1} parent=59 // pred_check
          %p694 = pneg %p264
        $region62: #{actor_critic_forward.1} parent=59 // pred_check_branch
          %696 = sbr.rel (%p694) target = $region64
        $region63: #{actor_critic_forward.1} parent=59 // pred_region
          %698 = vsyncadd %s688, 0
          %s699 = scalar_lea.hbm %s10, %s26
          %s701 = sshll.u32 %s690, 4
          %s702 = int_to_ptr.vmem [resolvable:$true] %s701
          %s703 = sshll.u32 %s699, 4
          %s704 = int_to_ptr.hbm [resolvable:$true] %s703
          %706 = dma.vmem_to_hbm [thread:$0]  %s702, 16, %s704, %s688
        $region64: #{actor_critic_forward.1} parent=59 // pred_fallthru
          _
        // Predicated region
        $region65: #{actor_critic_forward.1} parent=59 // pred_check
          %p707 = pneg %p290
        $region66: #{actor_critic_forward.1} parent=59 // pred_check_branch
          %709 = sbr.rel (%p707) target = $region68
        $region67: #{actor_critic_forward.1} parent=59 // pred_region
          _
        $region68: #{actor_critic_forward.1} parent=59 // pred_fallthru
          _
      $region60: #{actor_critic_forward.1} parent=5 // pred_fallthru
        _
      %p710 = scmp.le.s32.totalorder 2, %s21
      // Predicated region
      $region69: #{actor_critic_forward.1} parent=5 // pred_check
        %p711 = pneg %p710
      $region70: #{actor_critic_forward.1} parent=5 // pred_check_branch
        %713 = sbr.rel (%p711) target = $region72
      $region71: #{actor_critic_forward.1} parent=5 // pred_region
        %s714 = ssub.s32 %s21, 2
        // Predicated region
        $region73: #{actor_critic_forward.1} parent=71 // pred_check
          %p715 = pneg %p270
        $region74: #{actor_critic_forward.1} parent=71 // pred_check_branch
          %717 = sbr.rel (%p715) target = $region76
        $region75: #{actor_critic_forward.1} parent=71 // pred_region
          %s718 = sand.u32 %s255, 1
          %s719 = scalar_lea.sflag [#allocation3], %s718
          %s720 = sand.u32 %s255, 1
          %s721 = scalar_lea.vmem [#allocation2], %s720
          %723 = dma.done %s719, 16
        $region76: #{actor_critic_forward.1} parent=71 // pred_fallthru
          _
        // Predicated region
        $region77: #{actor_critic_forward.1} parent=71 // pred_check
          %p724 = pneg %p296
        $region78: #{actor_critic_forward.1} parent=71 // pred_check_branch
          %726 = sbr.rel (%p724) target = $region80
        $region79: #{actor_critic_forward.1} parent=71 // pred_region
          %p727 = scmp.lt.s32.totalorder %s27, 1
          %s728 = scalar_select %p727, %s27, 1
          %s729 = scalar_lea.vmem %s11, %s728
        $region80: #{actor_critic_forward.1} parent=71 // pred_fallthru
          _
      $region72: #{actor_critic_forward.1} parent=5 // pred_fallthru
        _
    $region6: #{actor_critic_forward.1} parent=1 // loop_footer
      %s25 = sadd.s32 1, %s21
    $region7: #{actor_critic_forward.1} parent=1 // loop_footer_branch
      %20 = sbr.rel target = $region3
    $region8: #{actor_critic_forward.1} parent=1 // loop_exit
      _
    %730 = vsyncpa [#allocation3], 1
    %s731 = scalar_lea.sflag [#allocation3], 1
    %732 = vsyncpa %s731, 1

</llo_original>
